<compile_context>
chip_gen: v7x
topology: tpu7x:2x2x1
jax: 0.10.0
libtpu: 0.0.40
codegen_flags: <defaults>
</compile_context>

<pallas_src>
import math
import functools

import jax
import jax.numpy as jnp
from jax import lax
from jax.experimental import pallas as pl
from jax.experimental.pallas import tpu as pltpu

_INV_SQRT2 = 1.0 / math.sqrt(2.0)


def _mlp_kernel(x_ref, w1_ref, b1_ref, w2_ref, b2_ref, o_ref):
    """Fused (x @ W1 + b1) -> exact GELU -> (@ W2 + b2) on one row tile.

    Dropout has p=0.0 in the module (identity in eval mode), so it is a no-op.
    Matmul operands are cast to the (bf16) weight dtype so both dots run on
    the MXU at full rate; accumulation is requested in f32.
    """
    x = x_ref[...].astype(w1_ref.dtype)
    # fc1 (MXU, f32 accumulation)
    h = jnp.dot(x, w1_ref[...], preferred_element_type=jnp.float32)
    h = h + b1_ref[...]                                   # (1, hidden) broadcast
    # exact GELU (matches torch.nn.GELU default, approximate='none')
    h = 0.5 * h * (1.0 + lax.erf(h * _INV_SQRT2))
    # fc2 (MXU, f32 accumulation)
    o = jnp.dot(h.astype(w2_ref.dtype), w2_ref[...],
                preferred_element_type=jnp.float32)
    o = o + b2_ref[...]                                   # (1, out) broadcast
    o_ref[...] = o.astype(o_ref.dtype)


def _row_tile(M, block_m):
    """Row tile: multiple of 8 (or == M); prefer >= 2 grid steps (v7x 2 TCs)."""
    tm = min(block_m, M)
    if tm < M:
        tm = max(8, (tm // 8) * 8)            # (8, 128) sublane constraint
    if tm == M and M > 8:
        half = (-(-M // 2) + 7) // 8 * 8      # ceil(M/2) rounded up to 8
        if half < M:
            tm = half                          # >= 2 parallel grid steps
    return tm


@functools.partial(jax.jit, static_argnames=("block_m", "weight_dtype"))
def mlp_pallas(x, w1, b1, w2, b2, block_m=512, weight_dtype=jnp.bfloat16):
    """x: (B, S, in_features). Returns (B, S, out_features) in x.dtype."""
    B, S, D_in = x.shape
    D_hid = w1.shape[1]
    D_out = w2.shape[1]
    M = B * S
    x2 = x.reshape(M, D_in)

    # bf16 weights at rest in the kernel (half the HBM bytes / VMEM residency).
    w1c = w1.astype(weight_dtype)
    w2c = w2.astype(weight_dtype)
    b1c = b1.astype(jnp.float32)
    b2c = b2.astype(jnp.float32)

    tm = _row_tile(M, block_m)
    grid = (pl.cdiv(M, tm),)   # ragged last block: Pallas masks its stores

    itemsize_w = jnp.dtype(weight_dtype).itemsize
    itemsize_x = jnp.dtype(x.dtype).itemsize
    # VMEM estimate: double-buffered x/out tiles, double-buffered resident
    # weights + biases, plus f32 intermediates. Clamp with headroom < 64 MiB
    # (v7x physical VMEM); v5e/v6e have 128 MiB so this is always safe.
    est = (2 * (D_in * D_hid + D_hid * D_out) * itemsize_w
           + 2 * (D_hid + D_out) * 4
           + 2 * tm * (D_in + D_out) * itemsize_x
           + 3 * tm * D_hid * 4)
    vmem_limit = int(min(56 * 1024 * 1024,
                         max(32 * 1024 * 1024, int(est * 1.5))))

    flops = 2 * M * (D_in * D_hid + D_hid * D_out)
    bytes_accessed = (M * (D_in + D_out) * itemsize_x
                      + (D_in * D_hid + D_hid * D_out) * itemsize_w
                      + (D_hid + D_out) * 4)
    cost = pl.CostEstimate(flops=flops,
                           transcendentals=M * D_hid,      # erf per hidden elt
                           bytes_accessed=bytes_accessed)

    out = pl.pallas_call(
        _mlp_kernel,
        out_shape=jax.ShapeDtypeStruct((M, D_out), x.dtype),
        grid_spec=pltpu.PrefetchScalarGridSpec(
            num_scalar_prefetch=0,
            grid=grid,
            in_specs=[
                pl.BlockSpec((tm, D_in), lambda i: (i, 0)),      # x row tile
                pl.BlockSpec((D_in, D_hid), lambda i: (0, 0)),   # W1 (resident)
                pl.BlockSpec((1, D_hid), lambda i: (0, 0)),      # b1
                pl.BlockSpec((D_hid, D_out), lambda i: (0, 0)),  # W2 (resident)
                pl.BlockSpec((1, D_out), lambda i: (0, 0)),      # b2
            ],
            out_specs=pl.BlockSpec((tm, D_out), lambda i: (i, 0)),
        ),
        compiler_params=pltpu.CompilerParams(
            dimension_semantics=("parallel",),
            vmem_limit_bytes=vmem_limit),
        cost_estimate=cost,
    )(x2, w1c, b1c, w2c, b2c)

    return out.reshape(B, S, D_out)


def init_mlp_params(key, in_features, hidden_features, out_features,
                    dtype=jnp.float32):
    """Synthetic params (PyTorch nn.Linear init), stored transposed (in, out)."""
    k1, k2, k3, k4 = jax.random.split(key, 4)
    bound1 = 1.0 / math.sqrt(in_features)
    bound2 = 1.0 / math.sqrt(hidden_features)
    w1 = jax.random.uniform(k1, (in_features, hidden_features), dtype,
                            minval=-bound1, maxval=bound1)
    b1 = jax.random.uniform(k2, (1, hidden_features), dtype,
                            minval=-bound1, maxval=bound1)
    w2 = jax.random.uniform(k3, (hidden_features, out_features), dtype,
                            minval=-bound2, maxval=bound2)
    b2 = jax.random.uniform(k4, (1, out_features), dtype,
                            minval=-bound2, maxval=bound2)
    return w1, b1, w2, b2


def mlp_ref(x, w1, b1, w2, b2, weight_dtype=jnp.bfloat16):
    """Pure-JAX reference mirroring the kernel numerics (bf16 operands, f32 acc)."""
    h = jnp.dot(x.astype(weight_dtype), w1.astype(weight_dtype),
                preferred_element_type=jnp.float32) + b1[0].astype(jnp.float32)
    h = 0.5 * h * (1.0 + lax.erf(h * _INV_SQRT2))
    o = jnp.dot(h.astype(weight_dtype), w2.astype(weight_dtype),
                preferred_element_type=jnp.float32) + b2[0].astype(jnp.float32)
    return o.astype(x.dtype)


if __name__ == "__main__":
    # Small ViT-style MLP: batch=2, tokens (n_patches+1)=9, in=32, hidden=64,
    # out=32.  M=18 rows -> 2 grid steps with a ragged last block, exercising
    # the masked-store path.  p=0.0 -> dropout is identity.
    B, S = 2, 9
    in_features, hidden_features, out_features = 32, 64, 32

    key = jax.random.PRNGKey(0)
    kx, kp = jax.random.split(key)
    x = jax.random.normal(kx, (B, S, in_features), jnp.float32)
    w1, b1, w2, b2 = init_mlp_params(kp, in_features, hidden_features,
                                     out_features)

    out = mlp_pallas(x, w1, b1, w2, b2)
    out = jax.block_until_ready(out)

    ref = mlp_ref(x, w1, b1, w2, b2)
    assert out.shape == (B, S, out_features), out.shape
    # bf16 MXU operands with f32 accumulation: compare against the bf16-aware
    # reference with a tolerance appropriate for that precision.
    assert jnp.allclose(out, ref, atol=1e-2, rtol=1e-2), \
        float(jnp.max(jnp.abs(out - ref)))

    print("KERNEL_OK")
</pallas_src>

<mosaic_0001>
module attributes {stable_mosaic.version = 11 : i64} {
  func.func @_mlp_kernel(%arg0: i32, %arg1: memref<16x32xf32, #tpu.memory_space<vmem>>, %arg2: memref<32x64xbf16, #tpu.memory_space<vmem>>, %arg3: memref<1x64xf32, #tpu.memory_space<vmem>>, %arg4: memref<64x32xbf16, #tpu.memory_space<vmem>>, %arg5: memref<1x32xf32, #tpu.memory_space<vmem>>, %arg6: memref<16x32xf32, #tpu.memory_space<vmem>>) attributes {dimension_semantics = [#tpu.dimension_semantics<parallel>], iteration_bounds = array<i64: 2>, scalar_prefetch = 0 : i64, scratch_operands = 0 : i64, tpu.core_type = #tpu.core_type<tc>, window_params = [{transform_indices = @transform_0, window_bounds = array<i64: 16, 32>}, {pipeline_mode = #tpu.pipeline_mode<synchronous>, transform_indices = @transform_1, window_bounds = array<i64: 32, 64>}, {pipeline_mode = #tpu.pipeline_mode<synchronous>, transform_indices = @transform_2, window_bounds = array<i64: 1, 64>}, {pipeline_mode = #tpu.pipeline_mode<synchronous>, transform_indices = @transform_3, window_bounds = array<i64: 64, 32>}, {pipeline_mode = #tpu.pipeline_mode<synchronous>, transform_indices = @transform_4, window_bounds = array<i64: 1, 32>}, {transform_indices = @transform_5, window_bounds = array<i64: 16, 32>}]} {
    %c0 = arith.constant 0 : index
    %c0_0 = arith.constant 0 : index
    %0 = vector.load %arg1[%c0, %c0_0] : memref<16x32xf32, #tpu.memory_space<vmem>>, vector<16x32xf32>
    %1 = arith.truncf %0 : vector<16x32xf32> to vector<16x32xbf16>
    %c0_1 = arith.constant 0 : index
    %c0_2 = arith.constant 0 : index
    %2 = vector.load %arg2[%c0_1, %c0_2] : memref<32x64xbf16, #tpu.memory_space<vmem>>, vector<32x64xbf16>
    %cst = arith.constant dense<0.000000e+00> : vector<16x64xf32>
    %3 = tpu.matmul %1, %2, %cst {dimension_numbers = #tpu.dot_dimension_numbers<[1], [0], [0], [1], [0, 0, 1, 1], [], []>} : vector<16x32xbf16>, vector<32x64xbf16>, vector<16x64xf32> -> vector<16x64xf32>
    %c0_3 = arith.constant 0 : index
    %c0_4 = arith.constant 0 : index
    %4 = vector.load %arg3[%c0_3, %c0_4] : memref<1x64xf32, #tpu.memory_space<vmem>>, vector<1x64xf32>
    %5 = vector.broadcast %4 : vector<1x64xf32> to vector<16x64xf32>
    %6 = arith.addf %3, %5 : vector<16x64xf32>
    %cst_5 = arith.constant 5.000000e-01 : f32
    %7 = vector.broadcast %cst_5 : f32 to vector<16x64xf32>
    %8 = arith.mulf %7, %6 : vector<16x64xf32>
    %cst_6 = arith.constant 0.707106769 : f32
    %9 = vector.broadcast %cst_6 : f32 to vector<16x64xf32>
    %10 = arith.mulf %6, %9 : vector<16x64xf32>
    %11 = math.erf %10 : vector<16x64xf32>
    %cst_7 = arith.constant 1.000000e+00 : f32
    %12 = vector.broadcast %cst_7 : f32 to vector<16x64xf32>
    %13 = arith.addf %12, %11 : vector<16x64xf32>
    %14 = arith.mulf %8, %13 : vector<16x64xf32>
    %15 = arith.truncf %14 : vector<16x64xf32> to vector<16x64xbf16>
    %c0_8 = arith.constant 0 : index
    %c0_9 = arith.constant 0 : index
    %16 = vector.load %arg4[%c0_8, %c0_9] : memref<64x32xbf16, #tpu.memory_space<vmem>>, vector<64x32xbf16>
    %cst_10 = arith.constant dense<0.000000e+00> : vector<16x32xf32>
    %17 = tpu.matmul %15, %16, %cst_10 {dimension_numbers = #tpu.dot_dimension_numbers<[1], [0], [0], [1], [0, 0, 1, 1], [], []>} : vector<16x64xbf16>, vector<64x32xbf16>, vector<16x32xf32> -> vector<16x32xf32>
    %c0_11 = arith.constant 0 : index
    %c0_12 = arith.constant 0 : index
    %18 = vector.load %arg5[%c0_11, %c0_12] : memref<1x32xf32, #tpu.memory_space<vmem>>, vector<1x32xf32>
    %19 = vector.broadcast %18 : vector<1x32xf32> to vector<16x32xf32>
    %20 = arith.addf %17, %19 : vector<16x32xf32>
    %c0_13 = arith.constant 0 : index
    %c0_14 = arith.constant 0 : index
    %21 = vector.load %arg6[%c0_13, %c0_14] : memref<16x32xf32, #tpu.memory_space<vmem>>, vector<16x32xf32>
    tpu.vector_store %arg6[%c0_13, %c0_14], %20 {strides = array<i32>} : memref<16x32xf32, #tpu.memory_space<vmem>>, vector<16x32xf32>,
    return
  }
  func.func @transform_0(%arg0: i32) -> (i32, i32) {
    %c0_i32 = arith.constant 0 : i32
    %c0_i32_0 = arith.constant 0 : i32
    return %arg0, %c0_i32 : i32, i32
  }
  func.func @transform_1(%arg0: i32) -> (i32, i32) {
    %c0_i32 = arith.constant 0 : i32
    %c0_i32_0 = arith.constant 0 : i32
    %c0_i32_1 = arith.constant 0 : i32
    return %c0_i32, %c0_i32_0 : i32, i32
  }
  func.func @transform_2(%arg0: i32) -> (i32, i32) {
    %c0_i32 = arith.constant 0 : i32
    %c0_i32_0 = arith.constant 0 : i32
    %c0_i32_1 = arith.constant 0 : i32
    return %c0_i32, %c0_i32_0 : i32, i32
  }
  func.func @transform_3(%arg0: i32) -> (i32, i32) {
    %c0_i32 = arith.constant 0 : i32
    %c0_i32_0 = arith.constant 0 : i32
    %c0_i32_1 = arith.constant 0 : i32
    return %c0_i32, %c0_i32_0 : i32, i32
  }
  func.func @transform_4(%arg0: i32) -> (i32, i32) {
    %c0_i32 = arith.constant 0 : i32
    %c0_i32_0 = arith.constant 0 : i32
    %c0_i32_1 = arith.constant 0 : i32
    return %c0_i32, %c0_i32_0 : i32, i32
  }
  func.func @transform_5(%arg0: i32) -> (i32, i32) {
    %c0_i32 = arith.constant 0 : i32
    %c0_i32_0 = arith.constant 0 : i32
    return %arg0, %c0_i32 : i32, i32
  }
}

</mosaic_0001>

<llo_original>
// kernel: mlp_pallas.1
$region0: #{mlp_pallas.1}
  #allocation0 [shape = 'u32[]', space=smem, size = 0x4, offset = 0x4, fixed_abs, tag = 'smem constant byte address 0x4 - core index']
  #allocation1 [shape = 'u32[144,128]{1,0:T(1,128)}', space=vmem, size = 0x12000, scoped, tag = 'internal scratch']
  %s0 = inlined_call_operand.vmem [shape: f32[18,32], index: 0, kind: input, shape index: {}]
  %s1 = inlined_call_operand.vmem [shape: bf16[32,64], index: 1, kind: input, shape index: {}]
  %s2 = inlined_call_operand.vmem [shape: f32[1,64], index: 2, kind: input, shape index: {}]
  %s3 = inlined_call_operand.vmem [shape: bf16[64,32], index: 3, kind: input, shape index: {}]
  %s4 = inlined_call_operand.vmem [shape: f32[1,32], index: 4, kind: input, shape index: {}]
  %s5 = inlined_call_operand.vmem [shape: f32[18,32], index: 5, kind: output, shape index: {}]
  %s6 = sld [smem:[#allocation0]]
  $region101: #{mlp_pallas.1} parent=0
    _
  %s8 = ssub.s32 1, %s6
  %s9 = scalar_select 0, %s8, %s6
  $region1: #{mlp_pallas.1} parent=0
    #allocation2 [shape = 'u8[16384]{0}', space=vmem, size = 0x4000, scoped, tag = 'output window, operand 0']
    loop: start=0, step=1, limit=4
    $region2: #{mlp_pallas.1} parent=1 // loop_pre_header
      _
    $region3: #{mlp_pallas.1} parent=1 // loop_header
      %s11 = sphi 0, %s15
      %p12 = scmp.ge.s32.totalorder %s11, 4
      %s21 = sphi 0, %s23
      %s24 = sphi 0, %s21
      %s25 = sphi 0, %s24
      %s41 = sphi 0, %s25
      %s45 = sphi 0, %s45
      %s47 = sphi 0, %s45
      %s48 = sphi 0, %s47
      %s62 = sphi 0, %s48
      %s66 = sphi 0, %s66
      %s68 = sphi 0, %s66
      %s69 = sphi 0, %s68
      %s83 = sphi 0, %s69
      %s87 = sphi 0, %s87
      %s89 = sphi 0, %s87
      %s90 = sphi 0, %s89
      %s104 = sphi 0, %s90
      %s108 = sphi 0, %s108
      %s110 = sphi 0, %s108
      %s111 = sphi 0, %s110
      %s125 = sphi 0, %s111
      %s131 = sphi 0, %s133
      %s134 = sphi 0, %s131
      %s135 = sphi 0, %s134
      %s151 = sphi 0, %s135
    $region4: #{mlp_pallas.1} parent=1 // loop_header_branch
      %14 = sbr.rel (%p12) target = $region8
    $region5: #{mlp_pallas.1} parent=1 // loop_body
      %s16 = ssub.s32 %s11, 1
      %s17 = ssub.s32 %s11, 2
      %s18 = sadd.s32 %s11, 1
      %s19 = ssub.s32 %s11, %s18
      %p20 = scmp.eq.s32.totalorder %s19, 0
      %s22 = sadd.s32 %s21, 1
      %s23 = scalar_select %p20, %s21, %s22
      %p26 = pneg %p20
      %p27 = scmp.eq.s32.totalorder %s11, 1
      %p28 = por %p26, %p27
      %p29 = scmp.ne.s32.totalorder %s21, %s24
      %p30 = scmp.eq.s32.totalorder %s11, 0
      %p31 = por %p29, %p30
      %p32 = scmp.ne.s32.totalorder %s21, %s24
      %p33 = scmp.eq.s32.totalorder %s16, 1
      %p34 = por %p32, %p33
      %p35 = scmp.ne.s32.totalorder %s24, %s25
      %p36 = scmp.eq.s32.totalorder %s16, 0
      %p37 = por %p35, %p36
      %p38 = scmp.ne.s32.totalorder %s24, %s25
      %p39 = scmp.eq.s32.totalorder %s17, 1
      %p40 = por %p38, %p39
      %p42 = scmp.ne.s32.totalorder %s25, %s41
      %p43 = scmp.eq.s32.totalorder %s17, 0
      %p44 = por %p42, %p43
      %s46 = sadd.s32 %s45, 1
      %p49 = scmp.eq.s32.totalorder %s11, 1
      %p50 = scmp.ne.s32.totalorder %s45, %s47
      %p51 = scmp.eq.s32.totalorder %s11, 0
      %p52 = por %p50, %p51
      %p53 = scmp.ne.s32.totalorder %s45, %s47
      %p54 = scmp.eq.s32.totalorder %s16, 1
      %p55 = por %p53, %p54
      %p56 = scmp.ne.s32.totalorder %s47, %s48
      %p57 = scmp.eq.s32.totalorder %s16, 0
      %p58 = por %p56, %p57
      %p59 = scmp.ne.s32.totalorder %s47, %s48
      %p60 = scmp.eq.s32.totalorder %s17, 1
      %p61 = por %p59, %p60
      %p63 = scmp.ne.s32.totalorder %s48, %s62
      %p64 = scmp.eq.s32.totalorder %s17, 0
      %p65 = por %p63, %p64
      %s67 = sadd.s32 %s66, 1
      %p70 = scmp.eq.s32.totalorder %s11, 1
      %p71 = scmp.ne.s32.totalorder %s66, %s68
      %p72 = scmp.eq.s32.totalorder %s11, 0
      %p73 = por %p71, %p72
      %p74 = scmp.ne.s32.totalorder %s66, %s68
      %p75 = scmp.eq.s32.totalorder %s16, 1
      %p76 = por %p74, %p75
      %p77 = scmp.ne.s32.totalorder %s68, %s69
      %p78 = scmp.eq.s32.totalorder %s16, 0
      %p79 = por %p77, %p78
      %p80 = scmp.ne.s32.totalorder %s68, %s69
      %p81 = scmp.eq.s32.totalorder %s17, 1
      %p82 = por %p80, %p81
      %p84 = scmp.ne.s32.totalorder %s69, %s83
      %p85 = scmp.eq.s32.totalorder %s17, 0
      %p86 = por %p84, %p85
      %s88 = sadd.s32 %s87, 1
      %p91 = scmp.eq.s32.totalorder %s11, 1
      %p92 = scmp.ne.s32.totalorder %s87, %s89
      %p93 = scmp.eq.s32.totalorder %s11, 0
      %p94 = por %p92, %p93
      %p95 = scmp.ne.s32.totalorder %s87, %s89
      %p96 = scmp.eq.s32.totalorder %s16, 1
      %p97 = por %p95, %p96
      %p98 = scmp.ne.s32.totalorder %s89, %s90
      %p99 = scmp.eq.s32.totalorder %s16, 0
      %p100 = por %p98, %p99
      %p101 = scmp.ne.s32.totalorder %s89, %s90
      %p102 = scmp.eq.s32.totalorder %s17, 1
      %p103 = por %p101, %p102
      %p105 = scmp.ne.s32.totalorder %s90, %s104
      %p106 = scmp.eq.s32.totalorder %s17, 0
      %p107 = por %p105, %p106
      %s109 = sadd.s32 %s108, 1
      %p112 = scmp.eq.s32.totalorder %s11, 1
      %p113 = scmp.ne.s32.totalorder %s108, %s110
      %p114 = scmp.eq.s32.totalorder %s11, 0
      %p115 = por %p113, %p114
      %p116 = scmp.ne.s32.totalorder %s108, %s110
      %p117 = scmp.eq.s32.totalorder %s16, 1
      %p118 = por %p116, %p117
      %p119 = scmp.ne.s32.totalorder %s110, %s111
      %p120 = scmp.eq.s32.totalorder %s16, 0
      %p121 = por %p119, %p120
      %p122 = scmp.ne.s32.totalorder %s110, %s111
      %p123 = scmp.eq.s32.totalorder %s17, 1
      %p124 = por %p122, %p123
      %p126 = scmp.ne.s32.totalorder %s111, %s125
      %p127 = scmp.eq.s32.totalorder %s17, 0
      %p128 = por %p126, %p127
      %s129 = ssub.s32 %s11, %s18
      %p130 = scmp.eq.s32.totalorder %s129, 0
      %s132 = sadd.s32 %s131, 1
      %s133 = scalar_select %p130, %s131, %s132
      %p136 = pneg %p130
      %p137 = scmp.eq.s32.totalorder %s11, 1
      %p138 = por %p136, %p137
      %p139 = scmp.ne.s32.totalorder %s131, %s134
      %p140 = scmp.eq.s32.totalorder %s11, 0
      %p141 = por %p139, %p140
      %p142 = scmp.ne.s32.totalorder %s131, %s134
      %p143 = scmp.eq.s32.totalorder %s16, 1
      %p144 = por %p142, %p143
      %p145 = scmp.ne.s32.totalorder %s134, %s135
      %p146 = scmp.eq.s32.totalorder %s16, 0
      %p147 = por %p145, %p146
      %p148 = scmp.ne.s32.totalorder %s134, %s135
      %p149 = scmp.eq.s32.totalorder %s17, 1
      %p150 = por %p148, %p149
      %p152 = scmp.ne.s32.totalorder %s135, %s151
      %p153 = scmp.eq.s32.totalorder %s17, 0
      %p154 = por %p152, %p153
      %p155 = scmp.le.s32.totalorder 1, %s11
      %p156 = scmp.lt.s32.totalorder %s11, 3
      %p157 = pnand %p155, %p156
      %p158 = pneg %p157
      // Predicated region
      $region9: #{mlp_pallas.1} parent=5 // pred_check
        _
      $region10: #{mlp_pallas.1} parent=5 // pred_check_branch
        %160 = sbr.rel (%p157) target = $region12
      $region11: #{mlp_pallas.1} parent=5 // pred_region
        %s161 = ssub.s32 %s11, 1
        // Predicated region
        $region13: #{mlp_pallas.1} parent=11 // pred_check
          %p162 = pneg %p58
        $region14: #{mlp_pallas.1} parent=11 // pred_check_branch
          %164 = sbr.rel (%p162) target = $region16
        $region15: #{mlp_pallas.1} parent=11 // pred_region
          _
        $region16: #{mlp_pallas.1} parent=11 // pred_fallthru
          _
        // Predicated region
        $region17: #{mlp_pallas.1} parent=11 // pred_check
          %p165 = pneg %p79
        $region18: #{mlp_pallas.1} parent=11 // pred_check_branch
          %167 = sbr.rel (%p165) target = $region20
        $region19: #{mlp_pallas.1} parent=11 // pred_region
          _
        $region20: #{mlp_pallas.1} parent=11 // pred_fallthru
          _
        // Predicated region
        $region21: #{mlp_pallas.1} parent=11 // pred_check
          %p168 = pneg %p100
        $region22: #{mlp_pallas.1} parent=11 // pred_check_branch
          %170 = sbr.rel (%p168) target = $region24
        $region23: #{mlp_pallas.1} parent=11 // pred_region
          _
        $region24: #{mlp_pallas.1} parent=11 // pred_fallthru
          _
        // Predicated region
        $region25: #{mlp_pallas.1} parent=11 // pred_check
          %p171 = pneg %p121
        $region26: #{mlp_pallas.1} parent=11 // pred_check_branch
          %173 = sbr.rel (%p171) target = $region28
        $region27: #{mlp_pallas.1} parent=11 // pred_region
          _
        $region28: #{mlp_pallas.1} parent=11 // pred_fallthru
          _
      $region12: #{mlp_pallas.1} parent=5 // pred_fallthru
        _
      %p174 = scmp.lt.s32.totalorder %s11, 2
      // Predicated region
      $region29: #{mlp_pallas.1} parent=5 // pred_check
        %p175 = pneg %p174
      $region30: #{mlp_pallas.1} parent=5 // pred_check_branch
        %177 = sbr.rel (%p175) target = $region32
      $region31: #{mlp_pallas.1} parent=5 // pred_region
        // Predicated region
        $region33: #{mlp_pallas.1} parent=31 // pred_check
          %p178 = pneg %p31
        $region34: #{mlp_pallas.1} parent=31 // pred_check_branch
          %180 = sbr.rel (%p178) target = $region36
        $region35: #{mlp_pallas.1} parent=31 // pred_region
          %s181 = smul.u32 2, %s11
          %s182 = ssub.s32 3, %s181
          %p183 = scmp.lt.s32.totalorder %s182, 2
          %s184 = scalar_select %p183, %s182, 2
          %s185 = smul.u32 128, %s184
          %p186 = scmp.lt.s32.totalorder %s181, 2
          %s187 = scalar_select %p186, %s181, 2
          %s188 = smul.addr %s187, 8
          %s189 = scalar_lea.vmem %s0, %s188
          %s190 = smul.u32 2, %s11
          %s191 = ssub.s32 3, %s190
          %p192 = scmp.lt.s32.totalorder %s191, 2
          %s193 = scalar_select %p192, %s191, 2
          %s194 = smul.u32 128, %s193
        $region36: #{mlp_pallas.1} parent=31 // pred_fallthru
          _
      $region32: #{mlp_pallas.1} parent=5 // pred_fallthru
        _
      %p195 = scmp.le.s32.totalorder 1, %s11
      %p196 = scmp.lt.s32.totalorder %s11, 3
      %p197 = pnand %p195, %p196
      %p198 = pneg %p197
      // Predicated region
      $region37: #{mlp_pallas.1} parent=5 // pred_check
        _
      $region38: #{mlp_pallas.1} parent=5 // pred_check_branch
        %200 = sbr.rel (%p197) target = $region40
      $region39: #{mlp_pallas.1} parent=5 // pred_region
        %s201 = ssub.s32 %s11, 1
        %s202 = smul.u32 2, %s16
        %s203 = ssub.s32 3, %s202
        %p204 = scmp.lt.s32.totalorder %s203, 2
        %s205 = scalar_select %p204, %s203, 2
        %s206 = smul.u32 128, %s205
        %p207 = scmp.lt.s32.totalorder %s202, 2
        %s208 = scalar_select %p207, %s202, 2
        %s209 = smul.addr %s208, 8
        %s210 = scalar_lea.vmem %s0, %s209
        %p211 = pneg %p37
        %p212 = pneg %p34
        %p213 = pneg %p58
        %p214 = pneg %p55
        %p215 = pneg %p79
        %p216 = pneg %p76
        %p217 = pneg %p100
        %p218 = pneg %p97
        %p219 = pneg %p121
        %p220 = pneg %p118
        %p221 = pneg %p147
        %p222 = pneg %p144
        %s223 = sand.u32 %s134, 1
        %s224 = sand.u32 %s134, 1
        %s225 = smul.addr %s224, 16
        %s226 = scalar_lea.vmem [#allocation2], %s225
        %s227 = smul.u32 2, %s16
        %s228 = ssub.s32 3, %s227
        %p229 = scmp.lt.s32.totalorder %s228, 2
        %s230 = scalar_select %p229, %s228, 2
        %s231 = smul.u32 128, %s230
        %p232 = scmp.lt.s32.totalorder %s227, 2
        %s233 = scalar_select %p232, %s227, 2
        %s234 = smul.addr %s233, 8
        %s235 = scalar_lea.vmem %s0, %s234
        %s236 = smul.u32 2, %s16
        %s237 = ssub.s32 3, %s236
        %p238 = scmp.lt.s32.totalorder %s237, 2
        %s239 = scalar_select %p238, %s237, 2
        %s240 = smul.u32 128, %s239
        %s241 = smul.u32 2, %s16
        %s242 = ssub.s32 3, %s241
        %p243 = scmp.lt.s32.totalorder %s242, 2
        %s244 = scalar_select %p243, %s242, 2
        %s245 = smul.u32 128, %s244
        %v247 = vld [vmem:[%s235] sm:$0xff]
        %v248 = vld [vmem:[%s235 + $0x8] sm:$0xff]
        %v249 = vpack.c.bf16 %v248, %v247
        %v250 = vld [vmem:[%s1] sm:$0xf]
        %v251 = vld [vmem:[%s1 + $0x4] sm:$0xf]
        %v252 = vld [vmem:[%s1 + $0x8] sm:$0xf]
        %v253 = vld [vmem:[%s1 + $0xc] sm:$0xf]
        %v254 = vld [vmem:[%s2] sm:$0x1]
        %v256 = vlaneseq
        %v257 = vshrl.u32 %v256, 7
        %v258 = vsub.s32 0, %v257
        %v259 = vrot.slane %v254, %v258
        %v265 = vunpack.c.l.b16 %v250
        %v266 = vunpack.c.l.b16 %v251
        %v267 = vunpack.c.l.b16 %v252
        %v268 = vunpack.c.l.b16 %v253
        %v269 = vpack.c.b16 %v266, %v265
        %v270 = vpack.c.b16 %v268, %v267
        %vm273 = vcmask 261120
        %v275 = vsel %vm273, %v249, 0
        %277 = vmatprep.subr.bf16.mxu0 0
        %278 = vmatpush1.bf16.msra.mxu0 %v269
        %279 = vmatprep.subr.bf16.mxu0 0
        %280 = vmatpush1.bf16.msra.mxu0 %v270
        %281 = vmatprep.subr.bf16.mxu0 0
        %282 = vmatpush1.bf16.msra.mxu0 0
        %283 = vmatprep.subr.bf16.mxu0 0
        %284 = vmatpush1.bf16.msra.mxu0 0
        %285 = vmatprep.subr.bf16.mxu0 0
        %286 = vmatpush1.bf16.msra.mxu0 0
        %287 = vmatprep.subr.bf16.mxu0 0
        %288 = vmatpush1.bf16.msra.mxu0 0
        %289 = vmatprep.subr.bf16.mxu0 0
        %290 = vmatpush1.bf16.msra.mxu0 0
        %291 = vmatprep.subr.bf16.mxu0 0
        %292 = vmatpush1.bf16.msra.mxu0 0
        %293 = vmatprep.subr.bf16.mxu0 0
        %294 = vmatpush1.bf16.msra.mxu0 0
        %295 = vmatprep.subr.bf16.mxu0 0
        %296 = vmatpush1.bf16.msra.mxu0 0
        %297 = vmatprep.subr.bf16.mxu0 0
        %298 = vmatpush1.bf16.msra.mxu0 0
        %299 = vmatprep.subr.bf16.mxu0 0
        %300 = vmatpush1.bf16.msra.mxu0 0
        %301 = vmatprep.subr.bf16.mxu0 0
        %302 = vmatpush1.bf16.msra.mxu0 0
        %303 = vmatprep.subr.bf16.mxu0 0
        %304 = vmatpush1.bf16.msra.mxu0 0
        %305 = vmatprep.subr.bf16.mxu0 0
        %306 = vmatpush1.bf16.msra.mxu0 0
        %307 = vmatprep.subr.bf16.mxu0 0
        %308 = vmatpush1.bf16.msra.mxu0 0
        %309 = vmatprep.mubr.bf16.mxu0 0
        %310 = vmatmul.mubr.bf16.gmra.mrb[0].mxu0 %v275
        %v311 = vpop.f32.mrb[0].mxu0
        %v312 = vadd.f32 %v259, %v311
        %v313 = vpop.f32.mrb[0].mxu0
        %v314 = vpop.f32.mrb[0].mxu0
        %v315 = vadd.f32 %v259, %v314
        %v316 = vpop.f32.mrb[0].mxu0
        %317 = vdwg.mxu0
        %v318 = vmul.f32 %v312, 0.5
        %v319 = vmul.f32 %v315, 0.5
        %v320 = vmul.f32 %v312, 0.70710677
        %v321 = vmul.f32 %v315, 0.70710677
        %v322 = verf.f32.pop %v320
        %v323 = verf.f32.pop %v321
        %v324 = vadd.f32 %v322, 1.0
        %v325 = vadd.f32 %v323, 1.0
        %v326 = vmul.f32 %v318, %v324
        %v327 = vmul.f32 %v319, %v325
        %v328 = vpack.c.bf16 %v327, %v326
        %v329 = vld [vmem:[%s3] sm:$0xf]
        %v330 = vld [vmem:[%s3 + $0x4] sm:$0xf]
        %v331 = vld [vmem:[%s3 + $0x8] sm:$0xf]
        %v332 = vld [vmem:[%s3 + $0xc] sm:$0xf]
        %v333 = vld [vmem:[%s3 + $0x10] sm:$0xf]
        %v334 = vld [vmem:[%s3 + $0x14] sm:$0xf]
        %v335 = vld [vmem:[%s3 + $0x18] sm:$0xf]
        %v336 = vld [vmem:[%s3 + $0x1c] sm:$0xf]
        %v337 = vld [vmem:[%s4] sm:$0x1]
        %v339 = vlaneseq
        %v340 = vshrl.u32 %v339, 7
        %v341 = vsub.s32 0, %v340
        %v342 = vrot.slane %v337, %v341
        %v352 = vunpack.c.l.b16 %v329
        %v353 = vunpack.c.l.b16 %v330
        %v354 = vunpack.c.l.b16 %v331
        %v355 = vunpack.c.l.b16 %v332
        %v356 = vunpack.c.l.b16 %v333
        %v357 = vunpack.c.l.b16 %v334
        %v358 = vunpack.c.l.b16 %v335
        %v359 = vunpack.c.l.b16 %v336
        %v360 = vpack.c.b16 %v353, %v352
        %v361 = vpack.c.b16 %v355, %v354
        %v362 = vpack.c.b16 %v357, %v356
        %v363 = vpack.c.b16 %v359, %v358
        %vm368 = vcmask 523264
        %v370 = vsel %vm368, %v328, 0
        %372 = vmatprep.subr.bf16.mxu0 0
        %373 = vmatpush1.bf16.msra.mxu0 %v360
        %374 = vmatprep.subr.bf16.mxu0 0
        %375 = vmatpush1.bf16.msra.mxu0 %v361
        %376 = vmatprep.subr.bf16.mxu0 0
        %377 = vmatpush1.bf16.msra.mxu0 %v362
        %378 = vmatprep.subr.bf16.mxu0 0
        %379 = vmatpush1.bf16.msra.mxu0 %v363
        %380 = vmatprep.subr.bf16.mxu0 0
        %381 = vmatpush1.bf16.msra.mxu0 0
        %382 = vmatprep.subr.bf16.mxu0 0
        %383 = vmatpush1.bf16.msra.mxu0 0
        %384 = vmatprep.subr.bf16.mxu0 0
        %385 = vmatpush1.bf16.msra.mxu0 0
        %386 = vmatprep.subr.bf16.mxu0 0
        %387 = vmatpush1.bf16.msra.mxu0 0
        %388 = vmatprep.subr.bf16.mxu0 0
        %389 = vmatpush1.bf16.msra.mxu0 0
        %390 = vmatprep.subr.bf16.mxu0 0
        %391 = vmatpush1.bf16.msra.mxu0 0
        %392 = vmatprep.subr.bf16.mxu0 0
        %393 = vmatpush1.bf16.msra.mxu0 0
        %394 = vmatprep.subr.bf16.mxu0 0
        %395 = vmatpush1.bf16.msra.mxu0 0
        %396 = vmatprep.subr.bf16.mxu0 0
        %397 = vmatpush1.bf16.msra.mxu0 0
        %398 = vmatprep.subr.bf16.mxu0 0
        %399 = vmatpush1.bf16.msra.mxu0 0
        %400 = vmatprep.subr.bf16.mxu0 0
        %401 = vmatpush1.bf16.msra.mxu0 0
        %402 = vmatprep.subr.bf16.mxu0 0
        %403 = vmatpush1.bf16.msra.mxu0 0
        %404 = vmatprep.mubr.bf16.mxu0 0
        %405 = vmatmul.mubr.bf16.gmra.mrb[0].mxu0 %v370
        %v406 = vpop.f32.mrb[0].mxu0
        %v407 = vadd.f32 %v342, %v406
        %v408 = vpop.f32.mrb[0].mxu0
        %v409 = vpop.f32.mrb[0].mxu0
        %v410 = vadd.f32 %v342, %v409
        %v411 = vpop.f32.mrb[0].mxu0
        %412 = vdwg.mxu0
        %413 = vst.msk [vmem:[%s226] sm:$0xff] %vm273, %v407
        %414 = vst.msk [vmem:[%s226 + $0x8] sm:$0xff] %vm273, %v410
        %s415 = sand.u32 %s134, 1
        %s416 = sand.u32 %s134, 1
        %s417 = smul.addr %s416, 16
        %s418 = scalar_lea.vmem [#allocation2], %s417
        // Predicated region
        $region41: #{mlp_pallas.1} parent=39 // pred_check
          %p419 = pneg %p144
        $region42: #{mlp_pallas.1} parent=39 // pred_check_branch
          %421 = sbr.rel (%p419) target = $region44
        $region43: #{mlp_pallas.1} parent=39 // pred_region
          %s422 = smul.u32 2, %s16
          %s423 = ssub.s32 3, %s422
          %p424 = scmp.lt.s32.totalorder %s423, 2
          %s425 = scalar_select %p424, %s423, 2
          %s426 = smul.u32 128, %s425
          %p427 = scmp.ne.s32.totalorder 0, %s426
          %s428 = smul.addr %s422, 8
          %s429 = scalar_lea.vmem %s5, %s428
          // Predicated region
          $region45: #{mlp_pallas.1} parent=43 // pred_check
            %p430 = pneg %p427
          $region46: #{mlp_pallas.1} parent=43 // pred_check_branch
            %432 = sbr.rel (%p430) target = $region48
          $region47: #{mlp_pallas.1} parent=43 // pred_region
            // Predicated region
            $region49: #{mlp_pallas.1} parent=47 // pred_check
              _
            $region50: #{mlp_pallas.1} parent=47 // pred_check_branch
              %434 = sbr.rel (0) target = $region52
            $region51: #{mlp_pallas.1} parent=47 // pred_region
              // Predicated region
              $region71: #{mlp_pallas.1} parent=51 // pred_check
                _
              $region72: #{mlp_pallas.1} parent=51 // pred_check_branch
                %485 = sbr.rel (0) target = $region74
              $region73: #{mlp_pallas.1} parent=51 // pred_region
                %s486 = sshrl.u32 %s425, 1
                // While loop
                $region75: #{mlp_pallas.1} parent=73 // loop_pre_header
                  _
                $region76: #{mlp_pallas.1} parent=73 // loop_header
                  %s488 = sphi 0, %s490
                  %p489 = scmp.ge.s32.totalorder %s488, %s486
                  %s493 = sphi 0, %s502
                  %s494 = sphi %s418, %s505
                  %s495 = sphi %s429, %s506
                $region77: #{mlp_pallas.1} parent=73 // loop_header_branch
                  %492 = sbr.rel (%p489) target = $region81
                $region78: #{mlp_pallas.1} parent=73 // loop_body
                  %v496 = vld [vmem:[%s494] sm:$0xff]
                  %497 = vst [vmem:[%s495] sm:$0xff] %v496
                  %v498 = vld [vmem:[%s494 + $0x8] sm:$0xff]
                  %499 = vst [vmem:[%s495 + $0x8] sm:$0xff] %v498
                  %s500 = sadd.s32 1, %s493
                  %p501 = scmp.ge.s32.totalorder %s500, %s486
                  %s502 = scalar_select %p501, 0, %s500
                  %s503 = smul.u32 %s502, 16
                  %s504 = smul.u32 %s502, 16
                  %s505 = scalar_lea.vmem %s418, %s503 [#allocation2]
                  %s506 = scalar_lea.vmem %s429, %s504
                $region79: #{mlp_pallas.1} parent=73 // loop_footer
                  %s490 = sadd.s32 %s488, 1
                $region80: #{mlp_pallas.1} parent=73 // loop_footer_branch
                  %487 = sbr.rel target = $region76
                $region81: #{mlp_pallas.1} parent=73 // loop_exit
                  _
                %s507 = sshrl.u32 %s425, 1
                %s508 = sand.u32 %s425, 1
                %s509 = smul.u32 %s507, 2
                %s510 = smul.u32 8, %s509
                %s511 = scalar_lea.vmem %s418, %s510 [#allocation2]
                %s512 = smul.u32 8, %s509
                %s513 = scalar_lea.vmem %s429, %s512
                // While loop
                $region82: #{mlp_pallas.1} parent=73 // loop_pre_header
                  _
                $region83: #{mlp_pallas.1} parent=73 // loop_header
                  %s515 = sphi 0, %s517
                  %p516 = scmp.ge.s32.totalorder %s515, %s508
                  %s520 = sphi 0, %s527
                  %s521 = sphi %s511, %s530
                  %s522 = sphi %s513, %s531
                $region84: #{mlp_pallas.1} parent=73 // loop_header_branch
                  %519 = sbr.rel (%p516) target = $region88
                $region85: #{mlp_pallas.1} parent=73 // loop_body
                  %v523 = vld [vmem:[%s521] sm:$0xff]
                  %524 = vst [vmem:[%s522] sm:$0xff] %v523
                  %s525 = sadd.s32 1, %s520
                  %p526 = scmp.ge.s32.totalorder %s525, %s508
                  %s527 = scalar_select %p526, 0, %s525
                  %s528 = smul.u32 %s527, 8
                  %s529 = smul.u32 %s527, 8
                  %s530 = scalar_lea.vmem %s511, %s528 [#allocation2]
                  %s531 = scalar_lea.vmem %s513, %s529
                $region86: #{mlp_pallas.1} parent=73 // loop_footer
                  %s517 = sadd.s32 %s515, 1
                $region87: #{mlp_pallas.1} parent=73 // loop_footer_branch
                  %514 = sbr.rel target = $region83
                $region88: #{mlp_pallas.1} parent=73 // loop_exit
                  _
              $region74: #{mlp_pallas.1} parent=51 // pred_fallthru
                _
              // Predicated region
              $region89: #{mlp_pallas.1} parent=51 // pred_check
                _
              $region90: #{mlp_pallas.1} parent=51 // pred_check_branch
                %533 = sbr.rel target = $region92
              $region91: #{mlp_pallas.1} parent=51 // pred_region
                _
              $region92: #{mlp_pallas.1} parent=51 // pred_fallthru
                _
            $region52: #{mlp_pallas.1} parent=47 // pred_fallthru
              _
            // Predicated region
            $region53: #{mlp_pallas.1} parent=47 // pred_check
              _
            $region54: #{mlp_pallas.1} parent=47 // pred_check_branch
              %436 = sbr.rel target = $region56
            $region55: #{mlp_pallas.1} parent=47 // pred_region
              %s438 = sshrl.u32 %s425, 1
              // While loop
              $region57: #{mlp_pallas.1} parent=55 // loop_pre_header
                _
              $region58: #{mlp_pallas.1} parent=55 // loop_header
                %s440 = sphi 0, %s442
                %p441 = scmp.ge.s32.totalorder %s440, %s438
                %s445 = sphi 0, %s454
                %s446 = sphi %s418, %s457
                %s447 = sphi %s429, %s458
              $region59: #{mlp_pallas.1} parent=55 // loop_header_branch
                %444 = sbr.rel (%p441) target = $region63
              $region60: #{mlp_pallas.1} parent=55 // loop_body
                %v448 = vld [vmem:[%s446] sm:$0xff]
                %449 = vst [vmem:[%s447] sm:$0xff] %v448
                %v450 = vld [vmem:[%s446 + $0x8] sm:$0xff]
                %451 = vst [vmem:[%s447 + $0x8] sm:$0xff] %v450
                %s452 = sadd.s32 1, %s445
                %p453 = scmp.ge.s32.totalorder %s452, %s438
                %s454 = scalar_select %p453, 0, %s452
                %s455 = smul.u32 %s454, 16
                %s456 = smul.u32 %s454, 16
                %s457 = scalar_lea.vmem %s418, %s455 [#allocation2]
                %s458 = scalar_lea.vmem %s429, %s456
              $region61: #{mlp_pallas.1} parent=55 // loop_footer
                %s442 = sadd.s32 %s440, 1
              $region62: #{mlp_pallas.1} parent=55 // loop_footer_branch
                %439 = sbr.rel target = $region58
              $region63: #{mlp_pallas.1} parent=55 // loop_exit
                _
              %s459 = sshrl.u32 %s425, 1
              %s460 = sand.u32 %s425, 1
              %s461 = smul.u32 %s459, 2
              %s462 = smul.u32 8, %s461
              %s463 = scalar_lea.vmem %s418, %s462 [#allocation2]
              %s464 = smul.u32 8, %s461
              %s465 = scalar_lea.vmem %s429, %s464
              // While loop
              $region64: #{mlp_pallas.1} parent=55 // loop_pre_header
                _
              $region65: #{mlp_pallas.1} parent=55 // loop_header
                %s467 = sphi 0, %s469
                %p468 = scmp.ge.s32.totalorder %s467, %s460
                %s472 = sphi 0, %s479
                %s473 = sphi %s463, %s482
                %s474 = sphi %s465, %s483
              $region66: #{mlp_pallas.1} parent=55 // loop_header_branch
                %471 = sbr.rel (%p468) target = $region70
              $region67: #{mlp_pallas.1} parent=55 // loop_body
                %v475 = vld [vmem:[%s473] sm:$0xff]
                %476 = vst [vmem:[%s474] sm:$0xff] %v475
                %s477 = sadd.s32 1, %s472
                %p478 = scmp.ge.s32.totalorder %s477, %s460
                %s479 = scalar_select %p478, 0, %s477
                %s480 = smul.u32 %s479, 8
                %s481 = smul.u32 %s479, 8
                %s482 = scalar_lea.vmem %s463, %s480 [#allocation2]
                %s483 = scalar_lea.vmem %s465, %s481
              $region68: #{mlp_pallas.1} parent=55 // loop_footer
                %s469 = sadd.s32 %s467, 1
              $region69: #{mlp_pallas.1} parent=55 // loop_footer_branch
                %466 = sbr.rel target = $region65
              $region70: #{mlp_pallas.1} parent=55 // loop_exit
                _
            $region56: #{mlp_pallas.1} parent=47 // pred_fallthru
              _
          $region48: #{mlp_pallas.1} parent=43 // pred_fallthru
            _
          %534 = vnop
        $region44: #{mlp_pallas.1} parent=39 // pred_fallthru
          _
      $region40: #{mlp_pallas.1} parent=5 // pred_fallthru
        _
      %p535 = scmp.le.s32.totalorder 2, %s11
      // Predicated region
      $region93: #{mlp_pallas.1} parent=5 // pred_check
        %p536 = pneg %p535
      $region94: #{mlp_pallas.1} parent=5 // pred_check_branch
        %538 = sbr.rel (%p536) target = $region96
      $region95: #{mlp_pallas.1} parent=5 // pred_region
        %s539 = ssub.s32 %s11, 2
        // Predicated region
        $region97: #{mlp_pallas.1} parent=95 // pred_check
          %p540 = pneg %p150
        $region98: #{mlp_pallas.1} parent=95 // pred_check_branch
          %542 = sbr.rel (%p540) target = $region100
        $region99: #{mlp_pallas.1} parent=95 // pred_region
          %s543 = sand.u32 %s135, 1
          %s544 = sand.u32 %s135, 1
          %s545 = smul.addr %s544, 16
          %s546 = scalar_lea.vmem [#allocation2], %s545
        $region100: #{mlp_pallas.1} parent=95 // pred_fallthru
          _
      $region96: #{mlp_pallas.1} parent=5 // pred_fallthru
        _
    $region6: #{mlp_pallas.1} parent=1 // loop_footer
      %s15 = sadd.s32 1, %s11
    $region7: #{mlp_pallas.1} parent=1 // loop_footer_branch
      %10 = sbr.rel target = $region3
    $region8: #{mlp_pallas.1} parent=1 // loop_exit
      _

</llo_original>
